<compile_context>
chip_gen: v7x
topology: tpu7x:2x2x1
jax: 0.10.0
libtpu: 0.0.40
codegen_flags: <defaults>
</compile_context>

<pallas_src>
import jax
import jax.numpy as jnp
from jax.experimental import pallas as pl
from jax.experimental.pallas import tpu as pltpu


def _round_down(x, m):
    return (x // m) * m


def _round_up(x, m):
    return -(-x // m) * m


def _sublane_multiple(dtype):
    # Sub-32-bit dtypes pack along sublanes: keep block row counts at
    # 8 (f32) / 16 (bf16) / 32 (int8, fp8) so output stores stay dense.
    itemsize = jnp.dtype(dtype).itemsize
    return max(8, 32 // max(1, itemsize))


# ---------------------------------------------------------------------------
# half_pool=False: pure strided HBM->HBM copy — no VMEM round trip.
# ---------------------------------------------------------------------------
def _make_copy_kernel(num_rows, feat_dim):
    def kernel(x_hbm, o_hbm, sem):
        # x_hbm: [B, T*D] in HBM; o_hbm: [B, D] in HBM.
        # One rectangular DMA: rows [0, B), first D columns of each row
        # (source row stride T*D elements, destination contiguous).
        cp = pltpu.make_async_copy(
            x_hbm.at[pl.ds(0, num_rows), pl.ds(0, feat_dim)],
            o_hbm,
            sem,
        )
        cp.start()
        cp.wait()

    return kernel


def _first_pool_copy(x_flat, B, D, dtype):
    return pl.pallas_call(
        _make_copy_kernel(B, D),
        out_shape=jax.ShapeDtypeStruct((B, D), dtype),
        grid=(1,),
        in_specs=[pl.BlockSpec(memory_space=pl.ANY)],   # stay in HBM
        out_specs=pl.BlockSpec(memory_space=pl.ANY),    # DMA writes it directly
        scratch_shapes=[pltpu.SemaphoreType.DMA],
        compiler_params=pltpu.CompilerParams(
            dimension_semantics=("arbitrary",),
        ),
    )(x_flat)


# ---------------------------------------------------------------------------
# half_pool=True: auto-pipelined BlockSpec load + VPU average of the halves.
# ---------------------------------------------------------------------------
def _make_half_pool_kernel(feat_dim, compute_in_f32):
    half = feat_dim // 2

    def kernel(x_ref, o_ref):
        # x_ref: (block_b, D) on the fast path, (block_b, T*D) on the fallback;
        # either way the t=0 slab is columns [0, D).  Slicing the *ref* keeps
        # the loads narrow and handles unaligned offsets cleanly.
        lo = x_ref[:, :half]
        hi = x_ref[:, half:feat_dim]
        if compute_in_f32:
            avg = (lo.astype(jnp.float32) + hi.astype(jnp.float32)) * 0.5
            o_ref[...] = avg.astype(o_ref.dtype)
        else:
            o_ref[...] = (lo + hi) * 0.5

    return kernel


def temporal_first_pool(features, half_pool=False, block_b=None):
    """Pallas equivalent of TemporalFirstPool.forward(features, _, __)."""
    B, T, D = features.shape
    dtype = features.dtype
    itemsize = jnp.dtype(dtype).itemsize

    # Copy-free reshape (contiguous layout): timestep 0 of row b == cols [0, D).
    x_flat = features.reshape(B, T * D)

    if not half_pool:
        # Result is exactly the strided t=0 slab -> single HBM->HBM DMA.
        return _first_pool_copy(x_flat, B, D, dtype)

    if D % 2 != 0:
        raise ValueError("half_pool requires an even feature dimension")
    out_dim = D // 2

    # Fast path: a (block_b, D) column-block 0 is lane-aligned iff D % 128 == 0.
    # Fallback loads whole rows (B*T*D moved instead of B*D) and slices inside.
    fast = (D % 128 == 0)
    cols = D if fast else T * D

    sub = _sublane_multiple(dtype)
    row_bytes = cols * itemsize
    if block_b is None:
        # ~8 MiB of input slab per block amortizes the ~0.35 us/step overhead.
        block_b = max(1, (8 << 20) // max(1, row_bytes))
        if B >= 2 * sub:
            # Keep >= 2 grid steps: load(i+1) overlaps store(i), and on v7x the
            # two TensorCores split the "parallel" grid axis.
            block_b = min(block_b, _round_up(pl.cdiv(B, 2), sub))
    block_b = int(max(1, min(block_b, B)))
    if block_b < B:
        # Tiled blocks need a sublane-multiple row count (dense stores and a
        # valid (8,128) block layout); full-extent blocks are always legal.
        block_b = max(_round_down(block_b, sub), min(sub, B))
        block_b = min(block_b, B)

    grid = pl.cdiv(B, block_b)

    # Cover 2x double-buffered input + 2x output + headroom explicitly so the
    # pipeline isn't silently shrunk on v5e's 16 MiB default scoped VMEM; stay
    # under v7x's 64 MiB physical VMEM.
    vmem_bytes = 2 * block_b * cols * itemsize + 2 * block_b * out_dim * itemsize
    vmem_limit = int(min(64 << 20, max(vmem_bytes + (4 << 20), 32 << 20)))

    compute_in_f32 = jnp.dtype(dtype) != jnp.float32

    return pl.pallas_call(
        _make_half_pool_kernel(D, compute_in_f32),
        out_shape=jax.ShapeDtypeStruct((B, out_dim), dtype),
        grid=(grid,),
        in_specs=[pl.BlockSpec((block_b, cols), lambda b: (b, 0))],
        out_specs=pl.BlockSpec((block_b, out_dim), lambda b: (b, 0)),
        compiler_params=pltpu.CompilerParams(
            dimension_semantics=("parallel",),
            vmem_limit_bytes=vmem_limit,
        ),
    )(x_flat)


if __name__ == "__main__":
    key = jax.random.PRNGKey(0)

    # Small demo shapes; D=256 keeps the half_pool output lane dim at 128.
    B, T, D = 4, 8, 256
    features = jax.random.normal(key, (B, T, D), dtype=jnp.float32)

    # half_pool=False -> pure HBM->HBM strided DMA path.
    out = temporal_first_pool(features, half_pool=False)
    jax.block_until_ready(out)
    ref = features[:, 0, :]
    assert out.shape == (B, D)
    assert jnp.allclose(out, ref, atol=1e-6), "half_pool=False mismatch"

    # half_pool=True (pairs element j with j + D/2, matching
    # reshape(-1, 2, D//2).mean(dim=1) of the PyTorch reference).
    out_half = temporal_first_pool(features, half_pool=True)
    jax.block_until_ready(out_half)
    ref_half = features[:, 0, :].reshape(-1, 2, D // 2).mean(axis=1)
    assert out_half.shape == (B, D // 2)
    assert jnp.allclose(out_half, ref_half, atol=1e-6), "half_pool=True mismatch"

    # Tiled pipelined path with a ragged batch tail (grid=3, last block partial).
    B2 = 20
    feats2 = jax.random.normal(jax.random.PRNGKey(1), (B2, T, D), dtype=jnp.float32)
    out2 = temporal_first_pool(feats2, half_pool=True, block_b=8)
    jax.block_until_ready(out2)
    ref2 = feats2[:, 0, :].reshape(-1, 2, D // 2).mean(axis=1)
    assert out2.shape == (B2, D // 2)
    assert jnp.allclose(out2, ref2, atol=1e-6), "chunked half_pool mismatch"

    out3 = temporal_first_pool(feats2, half_pool=False)
    jax.block_until_ready(out3)
    assert jnp.allclose(out3, feats2[:, 0, :], atol=1e-6), "copy-path mismatch"

    # bf16 exercise (f32 accumulation inside the kernel, dtype-aware rounding).
    feats_bf = feats2.astype(jnp.bfloat16)
    out_bf = temporal_first_pool(feats_bf, half_pool=True)
    jax.block_until_ready(out_bf)
    ref_bf = (feats_bf.astype(jnp.float32)[:, 0, :]
              .reshape(-1, 2, D // 2).mean(axis=1)).astype(jnp.bfloat16)
    assert jnp.allclose(out_bf.astype(jnp.float32), ref_bf.astype(jnp.float32),
                        atol=2e-2, rtol=1e-2), "bf16 half_pool mismatch"

    # Ragged feature dim (D % 128 != 0) exercises the whole-row fallback.
    B3, T3, D3 = 12, 4, 192
    feats3 = jax.random.normal(jax.random.PRNGKey(2), (B3, T3, D3), dtype=jnp.float32)
    out4 = temporal_first_pool(feats3, half_pool=True)
    jax.block_until_ready(out4)
    ref4 = feats3[:, 0, :].reshape(-1, 2, D3 // 2).mean(axis=1)
    assert out4.shape == (B3, D3 // 2)
    assert jnp.allclose(out4, ref4, atol=1e-6), "fallback half_pool mismatch"

    print("KERNEL_OK")
</pallas_src>

<mosaic_0001>
module attributes {stable_mosaic.version = 11 : i64} {
  func.func @kernel(%arg0: i32, %arg1: memref<4x2048xf32, #tpu.memory_space<any>>, %arg2: memref<4x256xf32, #tpu.memory_space<any>>, %arg3: memref<!tpu.dma_semaphore, #tpu.memory_space<semaphore_mem>>) attributes {dimension_semantics = [#tpu.dimension_semantics<arbitrary>], iteration_bounds = array<i64: 1>, scalar_prefetch = 0 : i64, scratch_operands = 1 : i64, tpu.core_type = #tpu.core_type<tc>, window_params = [{}, {}]} {
    %c0_i32 = arith.constant 0 : i32
    %c0_i32_0 = arith.constant 0 : i32
    %0 = tpu.memref_slice %arg1[%c0_i32, %c0_i32_0] : memref<4x2048xf32, #tpu.memory_space<any>> -> memref<4x256xf32, #tpu.memory_space<any>>
    tpu.enqueue_dma source(%0 : memref<4x256xf32, #tpu.memory_space<any>>) target(%arg2 : memref<4x256xf32, #tpu.memory_space<any>>) target_semaphore(%arg3 : memref<!tpu.dma_semaphore, #tpu.memory_space<semaphore_mem>>)
    %c0_i32_1 = arith.constant 0 : i32
    %c0_i32_2 = arith.constant 0 : i32
    %1 = tpu.memref_slice %arg1[%c0_i32_1, %c0_i32_2] : memref<4x2048xf32, #tpu.memory_space<any>> -> memref<4x256xf32, #tpu.memory_space<any>>
    tpu.wait_dma2 semaphore(%arg3 : memref<!tpu.dma_semaphore, #tpu.memory_space<semaphore_mem>>) src(%1 : memref<4x256xf32, #tpu.memory_space<any>>) dst(%arg2 : memref<4x256xf32, #tpu.memory_space<any>>)
    return
  }
}

</mosaic_0001>

<llo_original>
// kernel: tpu_custom_call.1
$region0: #{tpu_custom_call.1}
  #allocation0 [shape = 'u32[]', space=smem, size = 0x4, offset = 0x4, fixed_abs, tag = 'smem constant byte address 0x4 - core index']
  #allocation1 [shape = 'u32[144,128]{1,0:T(1,128)}', space=vmem, size = 0x12000, scoped, tag = 'internal scratch']
  #allocation2 [shape = 's32[1]{0}', space=sflag, size = 0x4, scoped, tag = 'scratch operand']
  #allocation3 [shape = 's32[]', space=sflag, size = 0x4, offset = 0, fixed_abs, tag = 'sflag constant byte address 0x0 - dummy sync flag']
  #allocation4 [shape = 'u32[0]{0}', space=smem, size = 0, offset = 0, fixed_abs, tag = 'smem constant byte address 0x0 - null']
  %s0 = inlined_call_operand.hbm [shape: f32[4,2048], index: 0, kind: input, shape index: {}]
  %s1 = inlined_call_operand.hbm [shape: f32[4,256], index: 1, kind: output, shape index: {}]
  %s2 = sld [smem:[#allocation0]]
  $region2: #{tpu_custom_call.1} parent=0
    _
  %s4 = ssub.s32 1, %s2
  %s5 = scalar_select 0, %s4, %s2
  %s7 = sshll.u32 1, 14
  %s8 = sxor.u32 4294967295, %s7
  %s11 = sshll.u32 3, 24
  %s12 = sxor.u32 4294967295, %s11
  %s13 = sand.u32 0, %s12
  %s15 = sor.u32 %s13, 0
  %18 = dma.general %s0, 128, %s1, [#allocation2], [#allocation3], [#allocation4], %s15, 0
  %s19 = smul.u32 4, 1
  %s20 = smul.u32 %s19, 2
  %s21 = sshll.u32 %s20, 4
  %22 = dma.done [#allocation2], %s21
  %23 = vsyncmov [#allocation2]
  %s24 = vpop.sfrf %23
  %p25 = scmp.eq.s32.totalorder %s24, 0
  %p26 = pneg %p25
  %28 = shalt.err (%p26)

</llo_original>
